<compile_context>
chip_gen: v6e
topology: v6e:2x2x1
jax: 0.10.0
libtpu: 0.0.40
codegen_flags: <defaults>
</compile_context>

<pallas_src>
import math

import jax
import jax.numpy as jnp
from jax.experimental import pallas as pl
from jax.experimental.pallas import tpu as pltpu

# --- constants -------------------------------------------------------------

_MIN_TILE = 8                              # sublane granularity
_VMEM_TILE_BYTES = 24 * 1024 * 1024        # double-buffered output budget (v7x-safe)
_PALLAS_MIN_OUT_BYTES = 512 * 1024         # below this: fall back / fuse with consumer

# Cody–Waite split of 2*pi: HI is exactly representable with few mantissa bits
# so k*HI is exact for the k range we see (k <~ 2^15); LO carries the rest.
_TWO_PI_HI = 6.28125
_TWO_PI_LO = 0.0019353071795864769
_INV_TWO_PI = 0.15915494309189535


# --- kernel ------------------------------------------------------------------

def _sinusoidal_kernel(t_ref, freqs_ref, o_ref):
    # t_ref:     [tb, 1]        f32   (time values for this batch tile)
    # freqs_ref: [1, half_dim]  f32   (same block every grid step -> resident)
    # o_ref:     [tb, dim]      out_dtype
    args = t_ref[...] * freqs_ref[...]                     # [tb, half_dim] f32

    # Explicit mod-2*pi range reduction (mul + floor + 2 fnma on otherwise-idle
    # VALU slots). Mosaic's own sin/cos range reduction loses precision at
    # |args| ~ 1e3; this restores ~1e-6 agreement with the XLA reference.
    k = jnp.floor(args * _INV_TWO_PI + 0.5)
    r = (args - k * _TWO_PI_HI) - k * _TWO_PI_LO

    # Single concatenated, lane-dense store (do NOT split into two half-width
    # masked stores — v5e has a single vector-store slot).
    out = jnp.concatenate([jnp.sin(r), jnp.cos(r)], axis=-1)
    o_ref[...] = out.astype(o_ref.dtype)


# --- wrapper -----------------------------------------------------------------

def _sinusoidal_reference(time: jax.Array, dim: int,
                          out_dtype=jnp.float32) -> jax.Array:
    """Pure-JAX port of the PyTorch forward (also the small-size fast path)."""
    half_dim = dim // 2
    scale = math.log(10000.0) / (half_dim - 1)
    freqs = jnp.exp(jnp.arange(half_dim, dtype=jnp.float32) * -scale)
    emb = time.astype(jnp.float32)[:, None] * freqs[None, :]
    return jnp.concatenate([jnp.sin(emb), jnp.cos(emb)], axis=-1).astype(out_dtype)


def _choose_tb(b: int, dim: int, block_b: int, out_itemsize: int) -> int:
    """Batch tile: VMEM-capped, >=2 grid steps for megacore, multiple of 8."""
    # Double-buffered output tile must fit scoped VMEM on every generation
    # (v7x: 64 MiB physical / 32 MiB scoped default -> keep 2*tb*dim*bytes small).
    vmem_cap = max(_MIN_TILE, _VMEM_TILE_BYTES // (2 * dim * out_itemsize))
    tb = min(block_b, vmem_cap, b)
    # Give the "parallel" batch axis at least 2 steps when B allows it so the
    # grid can shard across v7x's 2 TensorCores (harmless on v5e/v6e).
    if b >= 2 * _MIN_TILE and tb > (b + 1) // 2:
        tb = (b + 1) // 2
    if tb < b:
        tb = max(_MIN_TILE, (tb // _MIN_TILE) * _MIN_TILE)
    return tb


def sinusoidal_position_embeddings(time: jax.Array, dim: int, *,
                                   block_b: int = 2048,
                                   out_dtype=jnp.float32,
                                   force_pallas: bool = False) -> jax.Array:
    """Pallas equivalent of SinusoidalPositionEmbeddings(dim)(time).

    time: [B] array of timesteps. Returns [B, dim] of `out_dtype`.
    """
    assert dim % 2 == 0 and dim >= 4, "dim must be even and >= 4"
    half_dim = dim // 2
    b = time.shape[0]
    itemsize = jnp.dtype(out_dtype).itemsize

    # Small-problem / narrow-dim dispatch: let XLA fuse this into the consumer
    # (time-MLP) instead of paying launch + DMA setup for sub-microsecond work,
    # and avoid <128-lane masked output stores when dim < 128.
    # TODO(synk): in production, fuse this math into the consuming time-MLP
    # kernel's prologue instead of a separate op.
    if not force_pallas and (b * dim * itemsize < _PALLAS_MIN_OUT_BYTES or dim < 128):
        return _sinusoidal_reference(time, dim, out_dtype)

    t2d = time.astype(jnp.float32).reshape(b, 1)

    # Hoisted frequency table (computed once, outside the kernel body).
    scale = math.log(10000.0) / (half_dim - 1)
    freqs = jnp.exp(
        jnp.arange(half_dim, dtype=jnp.float32) * -scale).reshape(1, half_dim)

    tb = _choose_tb(b, dim, block_b, itemsize)
    grid = (pl.cdiv(b, tb),)

    cost = pl.CostEstimate(
        flops=4 * b * half_dim,                 # broadcast mul + range reduction
        transcendentals=b * dim,                # one sin + one cos per output pair
        bytes_accessed=b * dim * itemsize + b * 4 + half_dim * 4,
    )

    return pl.pallas_call(
        _sinusoidal_kernel,
        out_shape=jax.ShapeDtypeStruct((b, dim), out_dtype),
        grid_spec=pltpu.PrefetchScalarGridSpec(
            num_scalar_prefetch=0,
            grid=grid,
            in_specs=[
                pl.BlockSpec((tb, 1), lambda i: (i, 0)),
                pl.BlockSpec((1, half_dim), lambda i: (0, 0)),
            ],
            out_specs=pl.BlockSpec((tb, dim), lambda i: (i, 0)),
        ),
        compiler_params=pltpu.CompilerParams(
            dimension_semantics=("parallel",)),
        cost_estimate=cost,
    )(t2d, freqs)


# --- self-test ----------------------------------------------------------------

if __name__ == "__main__":
    key = jax.random.PRNGKey(0)

    # 1) DDPM-typical shape (B=8, dim=64): the wrapper dispatches to the fused
    #    pure-JAX path (a standalone pallas_call here is pure launch overhead).
    B, DIM = 8, 64
    t_small = jax.random.uniform(key, (B,), dtype=jnp.float32) * 1000.0
    out_small = jax.block_until_ready(sinusoidal_position_embeddings(t_small, DIM))
    ref_small = _sinusoidal_reference(t_small, DIM)
    assert out_small.shape == (B, DIM), out_small.shape
    assert jnp.allclose(out_small, ref_small, atol=1e-6, rtol=0.0), "fallback mismatch"

    # 2) Force the Pallas kernel at a small lane-dense shape (dim=128) so the
    #    TPU kernel itself is exercised. The in-kernel mod-2*pi range reduction
    #    keeps agreement with the XLA reference tight even at |args| ~ 1e3.
    B1, DIM1 = 8, 128
    t_pl = jax.random.uniform(jax.random.PRNGKey(0), (B1,), dtype=jnp.float32) * 1000.0
    out_pl = jax.block_until_ready(
        sinusoidal_position_embeddings(t_pl, DIM1, force_pallas=True))
    ref_pl = _sinusoidal_reference(t_pl, DIM1)
    assert out_pl.shape == (B1, DIM1), out_pl.shape
    assert jnp.allclose(out_pl, ref_pl, atol=2e-3, rtol=0.0), "pallas mismatch"

    # 3) Gridded Pallas path: several batch tiles plus a partial last tile
    #    (exercises the "parallel" grid axis and masked-row writeback).
    B2, DIM2 = 200, 128
    t_big = jax.random.uniform(jax.random.PRNGKey(1), (B2,), dtype=jnp.float32) * 1000.0
    out_big = jax.block_until_ready(
        sinusoidal_position_embeddings(t_big, DIM2, block_b=64, force_pallas=True))
    ref_big = _sinusoidal_reference(t_big, DIM2)
    assert out_big.shape == (B2, DIM2), out_big.shape
    assert jnp.allclose(out_big, ref_big, atol=2e-3, rtol=0.0), "gridded mismatch"

    print("KERNEL_OK")
</pallas_src>

<mosaic_0001>
module attributes {stable_mosaic.version = 11 : i64} {
  func.func @_sinusoidal_kernel(%arg0: i32, %arg1: memref<8x1xf32, #tpu.memory_space<vmem>>, %arg2: memref<1x64xf32, #tpu.memory_space<vmem>>, %arg3: memref<8x128xf32, #tpu.memory_space<vmem>>) attributes {dimension_semantics = [#tpu.dimension_semantics<parallel>], iteration_bounds = array<i64: 1>, scalar_prefetch = 0 : i64, scratch_operands = 0 : i64, tpu.core_type = #tpu.core_type<tc>, window_params = [{transform_indices = @transform_0, window_bounds = array<i64: 8, 1>}, {pipeline_mode = #tpu.pipeline_mode<synchronous>, transform_indices = @transform_1, window_bounds = array<i64: 1, 64>}, {transform_indices = @transform_2, window_bounds = array<i64: 8, 128>}]} {
    %c0 = arith.constant 0 : index
    %c0_0 = arith.constant 0 : index
    %0 = vector.load %arg1[%c0, %c0_0] : memref<8x1xf32, #tpu.memory_space<vmem>>, vector<8x1xf32>
    %c0_1 = arith.constant 0 : index
    %c0_2 = arith.constant 0 : index
    %1 = vector.load %arg2[%c0_1, %c0_2] : memref<1x64xf32, #tpu.memory_space<vmem>>, vector<1x64xf32>
    %2 = vector.broadcast %0 : vector<8x1xf32> to vector<8x64xf32>
    %3 = vector.broadcast %1 : vector<1x64xf32> to vector<8x64xf32>
    %4 = arith.mulf %2, %3 : vector<8x64xf32>
    %cst = arith.constant 0.159154937 : f32
    %5 = vector.broadcast %cst : f32 to vector<8x64xf32>
    %6 = arith.mulf %4, %5 : vector<8x64xf32>
    %cst_3 = arith.constant 5.000000e-01 : f32
    %7 = vector.broadcast %cst_3 : f32 to vector<8x64xf32>
    %8 = arith.addf %6, %7 : vector<8x64xf32>
    %9 = math.floor %8 : vector<8x64xf32>
    %cst_4 = arith.constant 6.281250e+00 : f32
    %10 = vector.broadcast %cst_4 : f32 to vector<8x64xf32>
    %11 = arith.mulf %9, %10 : vector<8x64xf32>
    %12 = arith.subf %4, %11 : vector<8x64xf32>
    %cst_5 = arith.constant 0.00193530717 : f32
    %13 = vector.broadcast %cst_5 : f32 to vector<8x64xf32>
    %14 = arith.mulf %9, %13 : vector<8x64xf32>
    %15 = arith.subf %12, %14 : vector<8x64xf32>
    %16 = math.sin %15 : vector<8x64xf32>
    %17 = math.cos %15 : vector<8x64xf32>
    %18 = tpu.concatenate %16, %17 in 1 : vector<8x64xf32>, vector<8x64xf32> -> vector<8x128xf32>
    %c0_6 = arith.constant 0 : index
    %c0_7 = arith.constant 0 : index
    %19 = vector.load %arg3[%c0_6, %c0_7] : memref<8x128xf32, #tpu.memory_space<vmem>>, vector<8x128xf32>
    tpu.vector_store %arg3[%c0_6, %c0_7], %18 {strides = array<i32>} : memref<8x128xf32, #tpu.memory_space<vmem>>, vector<8x128xf32>,
    return
  }
  func.func @transform_0(%arg0: i32) -> (i32, i32) {
    %c0_i32 = arith.constant 0 : i32
    %c0_i32_0 = arith.constant 0 : i32
    return %arg0, %c0_i32 : i32, i32
  }
  func.func @transform_1(%arg0: i32) -> (i32, i32) {
    %c0_i32 = arith.constant 0 : i32
    %c0_i32_0 = arith.constant 0 : i32
    %c0_i32_1 = arith.constant 0 : i32
    return %c0_i32, %c0_i32_0 : i32, i32
  }
  func.func @transform_2(%arg0: i32) -> (i32, i32) {
    %c0_i32 = arith.constant 0 : i32
    %c0_i32_0 = arith.constant 0 : i32
    return %arg0, %c0_i32 : i32, i32
  }
}

</mosaic_0001>

<llo_original>
// kernel: tpu_custom_call.1
$region0: #{tpu_custom_call.1}
  #allocation0 [shape = 'u32[]', space=smem, size = 0x4, offset = 0x4, fixed_abs, tag = 'smem constant byte address 0x4 - core index']
  #allocation1 [shape = 'u32[144,128]{1,0:T(1,128)}', space=vmem, size = 0x12000, scoped, tag = 'internal scratch']
  %s0 = inlined_call_operand.vmem [shape: f32[8,1], index: 0, kind: input, shape index: {}]
  %s1 = inlined_call_operand.vmem [shape: f32[1,64], index: 1, kind: input, shape index: {}]
  %s2 = inlined_call_operand.hbm [shape: f32[8,128], index: 2, kind: output, shape index: {}]
  %s3 = sld [smem:[#allocation0]]
  $region18: #{tpu_custom_call.1} parent=0
    _
  %s5 = ssub.s32 1, %s3
  %s6 = scalar_select 0, %s5, %s3
  $region1: #{tpu_custom_call.1} parent=0
    #allocation2 [shape = 'u8[4096]{0}', space=vmem, size = 0x1000, scoped, tag = 'output window, operand 0, single buffered']
    #allocation3 [shape = 's32[1]{0}', space=sflag, size = 0x4, scoped, tag = 'scoped memory for tpu_custom_call.1']
    %7 = vsyncpa [#allocation3], 0
    // Predicated region
    $region2: #{tpu_custom_call.1} parent=1 // pred_check
      _
    $region3: #{tpu_custom_call.1} parent=1 // pred_check_branch
      %9 = sbr.rel (0) target = $region5
    $region4: #{tpu_custom_call.1} parent=1 // pred_region
      _
    $region5: #{tpu_custom_call.1} parent=1 // pred_fallthru
      _
    // Predicated region
    $region6: #{tpu_custom_call.1} parent=1 // pred_check
      _
    $region7: #{tpu_custom_call.1} parent=1 // pred_check_branch
      %11 = sbr.rel (0) target = $region9
    $region8: #{tpu_custom_call.1} parent=1 // pred_region
      _
    $region9: #{tpu_custom_call.1} parent=1 // pred_fallthru
      _
    %v12 = vld [vmem:[%s0] sm:$0xff]
    %v13 = vld [vmem:[%s1] sm:$0x1]
    %15 = vset.pattern.permute.xlu0 0
    %16 = vperm.xlu0 %15, %v12
    %v17 = vpop.permute.xlu0 %16
    %v20 = vlaneseq
    %v21 = vshrl.u32 %v20, 7
    %v22 = vsub.s32 0, %v21
    %v23 = vrot.slane %v13, %v22
    %v25 = vmul.f32 %v17, %v23
    %v26 = vmul.f32 %v25, 0.15915494
    %v27 = vadd.f32 %v26, 0.5
    %v28 = vfloor.f32 %v27
    %v29 = vmul.f32 %v28, 6.28125
    %v30 = vsub.f32 %v25, %v29
    %v31 = vmul.f32 %v28, 0.0019353072
    %v32 = vsub.f32 %v30, %v31
    %v33 = vand.u32 2147483647, %v32
    %vm34 = vcmp.le.f32.partialorder %v33, 0.7853982
    %vm35 = vcmp.lt.s32.totalorder %v32, 0
    %v36 = vand.u32 %v32, 2139095040
    %v37 = vshrl.u32 %v36, 23
    %v38 = vsub.s32 %v37, 127
    %v39 = vand.u32 2147483647, %v32
    %v40 = vand.u32 %v39, 8388607
    %v41 = vor.u32 %v40, 8388608
    %v42 = vsub.s32 0, %v41
    %v43 = vadd.s32 %v38, 1
    %vm44 = vcmp.gt.s32.totalorder %v43, 0
    %v45 = vsel %vm44, %v43, 0
    %v46 = vshrl.u32 %v45, 5
    %v47 = vand.u32 %v45, 31
    %v48 = vsub.s32 32, %v47
    %v49 = vshrl.u32 683565275, %v48
    %v50 = vshll.u32 683565275, %v47
    %v51 = vshrl.u32 2475754826, %v48
    %v52 = vor.u32 %v50, %v51
    %v53 = vshll.u32 2475754826, %v47
    %v54 = vshrl.u32 2131351028, %v48
    %v55 = vor.u32 %v53, %v54
    %v56 = vshll.u32 2131351028, %v47
    %v57 = vshrl.u32 2102212464, %v48
    %v58 = vor.u32 %v56, %v57
    %v59 = vshll.u32 2102212464, %v47
    %v60 = vshrl.u32 920167782, %v48
    %v61 = vor.u32 %v59, %v60
    %v62 = vshll.u32 920167782, %v47
    %v63 = vshrl.u32 1326507024, %v48
    %v64 = vor.u32 %v62, %v63
    %vm65 = vcmp.lt.s32.totalorder %v46, 1
    %vm66 = vcmp.lt.s32.totalorder %v46, 2
    %vm67 = vcmp.lt.s32.totalorder %v46, 3
    %vm68 = vcmp.lt.s32.totalorder %v46, 4
    %v69 = vsel %vm65, %v49, %v52
    %v70 = vsel %vm68, %v58, 2102212464
    %v71 = vsel %vm67, %v55, %v70
    %v72 = vsel %vm66, %v69, %v71
    %v73 = vsel %vm65, %v52, %v55
    %v74 = vsel %vm68, %v61, 920167782
    %v75 = vsel %vm67, %v58, %v74
    %v76 = vsel %vm66, %v73, %v75
    %v77 = vsel %vm65, %v55, %v58
    %v78 = vsel %vm68, %v64, 1326507024
    %v79 = vsel %vm67, %v61, %v78
    %v80 = vsel %vm66, %v77, %v79
    %v81 = vshll.u32 %v41, 8
    %v82 = vmul.u32.u64.compose %v81, %v80
    %v83 = vextract.low.u32 %v82
    %v84 = vextract.high.u32 %v82
    %v85 = vmul.u32.u64.compose %v81, %v76
    %v86 = vextract.low.u32 %v85
    %v87 = vextract.high.u32 %v85
    %v88 = vmul.u32 %v81, %v72
    %v89 = vadd.s32 %v84, %v86
    %vm90 = vc.u32 %v84, %v86
    %v91 = vadd.s32 %v87, 1
    %v92 = vsel %vm90, %v91, %v87
    %v93 = vadd.s32 %v88, %v92
    %v94 = vadd.s32 %v93, 536870912
    %v95 = vshrl.u32 %v94, 30
    %v96 = vshll.u32 %v95, 30
    %v97 = vsub.s32 %v93, %v96
    %vm98 = vcmp.lt.s32.totalorder %v97, 0
    %v99 = vsub.s32 0, %v97
    %v100 = vsel %vm98, %v99, %v97
    %v101 = vclz %v100
    %v102 = vsub.s32 %v101, 2
    %vm103 = vcmp.gt.s32.totalorder 0, %v102
    %v104 = vsel %vm103, 0, %v102
    %v105 = vsub.s32 32, %v104
    %v106 = vshll.u32 %v97, %v104
    %v107 = vshrl.u32 %v89, %v105
    %v108 = vor.u32 %v106, %v107
    %v109 = vsub.s32 4294967266, %v104
    %v110 = vadd.s32 %v109, 127
    %v111 = vshll.u32 %v110, 23
    %v112 = vor.u32 4788187, %v111
    %v113 = vand.u32 2147483647, %v112
    %v115 = vcvt.s32.f32 %v108
    %v116 = vmul.f32 %v115, %v113
    %v117 = vxor.u32 %v116, 2147483648
    %v118 = vsel %vm35, %v117, %v116
    %v119 = vsub.s32 4, %v95
    %v120 = vsel %vm35, %v119, %v95
    %v121 = vsel %vm34, %v32, %v118
    %v122 = vsel %vm34, 0, %v120
    %v123 = vcosq.f32.pop %v121
    %v124 = vsinq.f32.pop %v121
    %vm125 = vweird.f32 %v32
    %v126 = vadd.s32 %v122, 3
    %v127 = vand.u32 %v126, 3
    %vm128 = vcmp.lt.s32.totalorder %v127, 2
    %vm129 = vcmp.eq.s32.totalorder %v127, 0
    %v130 = vxor.u32 %v124, 2147483648
    %v131 = vsel %vm129, %v123, %v130
    %vm132 = vcmp.eq.s32.totalorder %v127, 2
    %v133 = vxor.u32 %v123, 2147483648
    %v134 = vsel %vm132, %v133, %v124
    %v135 = vsel %vm128, %v131, %v134
    %v136 = vsel %vm125, nan, %v135
    %v137 = vand.u32 2147483647, %v32
    %vm138 = vcmp.le.f32.partialorder %v137, 0.7853982
    %vm139 = vcmp.lt.s32.totalorder %v32, 0
    %v140 = vand.u32 %v32, 2139095040
    %v141 = vshrl.u32 %v140, 23
    %v142 = vsub.s32 %v141, 127
    %v143 = vand.u32 2147483647, %v32
    %v144 = vand.u32 %v143, 8388607
    %v145 = vor.u32 %v144, 8388608
    %v146 = vsub.s32 0, %v145
    %v147 = vadd.s32 %v142, 1
    %vm148 = vcmp.gt.s32.totalorder %v147, 0
    %v149 = vsel %vm148, %v147, 0
    %v150 = vshrl.u32 %v149, 5
    %v151 = vand.u32 %v149, 31
    %v152 = vsub.s32 32, %v151
    %v153 = vshrl.u32 683565275, %v152
    %v154 = vshll.u32 683565275, %v151
    %v155 = vshrl.u32 2475754826, %v152
    %v156 = vor.u32 %v154, %v155
    %v157 = vshll.u32 2475754826, %v151
    %v158 = vshrl.u32 2131351028, %v152
    %v159 = vor.u32 %v157, %v158
    %v160 = vshll.u32 2131351028, %v151
    %v161 = vshrl.u32 2102212464, %v152
    %v162 = vor.u32 %v160, %v161
    %v163 = vshll.u32 2102212464, %v151
    %v164 = vshrl.u32 920167782, %v152
    %v165 = vor.u32 %v163, %v164
    %v166 = vshll.u32 920167782, %v151
    %v167 = vshrl.u32 1326507024, %v152
    %v168 = vor.u32 %v166, %v167
    %vm169 = vcmp.lt.s32.totalorder %v150, 1
    %vm170 = vcmp.lt.s32.totalorder %v150, 2
    %vm171 = vcmp.lt.s32.totalorder %v150, 3
    %vm172 = vcmp.lt.s32.totalorder %v150, 4
    %v173 = vsel %vm169, %v153, %v156
    %v174 = vsel %vm172, %v162, 2102212464
    %v175 = vsel %vm171, %v159, %v174
    %v176 = vsel %vm170, %v173, %v175
    %v177 = vsel %vm169, %v156, %v159
    %v178 = vsel %vm172, %v165, 920167782
    %v179 = vsel %vm171, %v162, %v178
    %v180 = vsel %vm170, %v177, %v179
    %v181 = vsel %vm169, %v159, %v162
    %v182 = vsel %vm172, %v168, 1326507024
    %v183 = vsel %vm171, %v165, %v182
    %v184 = vsel %vm170, %v181, %v183
    %v185 = vshll.u32 %v145, 8
    %v186 = vmul.u32.u64.compose %v185, %v184
    %v187 = vextract.low.u32 %v186
    %v188 = vextract.high.u32 %v186
    %v189 = vmul.u32.u64.compose %v185, %v180
    %v190 = vextract.low.u32 %v189
    %v191 = vextract.high.u32 %v189
    %v192 = vmul.u32 %v185, %v176
    %v193 = vadd.s32 %v188, %v190
    %vm194 = vc.u32 %v188, %v190
    %v195 = vadd.s32 %v191, 1
    %v196 = vsel %vm194, %v195, %v191
    %v197 = vadd.s32 %v192, %v196
    %v198 = vadd.s32 %v197, 536870912
    %v199 = vshrl.u32 %v198, 30
    %v200 = vshll.u32 %v199, 30
    %v201 = vsub.s32 %v197, %v200
    %vm202 = vcmp.lt.s32.totalorder %v201, 0
    %v203 = vsub.s32 0, %v201
    %v204 = vsel %vm202, %v203, %v201
    %v205 = vclz %v204
    %v206 = vsub.s32 %v205, 2
    %vm207 = vcmp.gt.s32.totalorder 0, %v206
    %v208 = vsel %vm207, 0, %v206
    %v209 = vsub.s32 32, %v208
    %v210 = vshll.u32 %v201, %v208
    %v211 = vshrl.u32 %v193, %v209
    %v212 = vor.u32 %v210, %v211
    %v213 = vsub.s32 4294967266, %v208
    %v214 = vadd.s32 %v213, 127
    %v215 = vshll.u32 %v214, 23
    %v216 = vor.u32 4788187, %v215
    %v217 = vand.u32 2147483647, %v216
    %v219 = vcvt.s32.f32 %v212
    %v220 = vmul.f32 %v219, %v217
    %v221 = vxor.u32 %v220, 2147483648
    %v222 = vsel %vm139, %v221, %v220
    %v223 = vsub.s32 4, %v199
    %v224 = vsel %vm139, %v223, %v199
    %v225 = vsel %vm138, %v32, %v222
    %v226 = vsel %vm138, 0, %v224
    %v227 = vcosq.f32.pop %v225
    %v228 = vsinq.f32.pop %v225
    %vm229 = vweird.f32 %v32
    %v230 = vand.u32 %v226, 3
    %vm231 = vcmp.lt.s32.totalorder %v230, 2
    %vm232 = vcmp.eq.s32.totalorder %v230, 0
    %v233 = vxor.u32 %v228, 2147483648
    %v234 = vsel %vm232, %v227, %v233
    %vm235 = vcmp.eq.s32.totalorder %v230, 2
    %v236 = vxor.u32 %v227, 2147483648
    %v237 = vsel %vm235, %v236, %v228
    %v238 = vsel %vm231, %v234, %v237
    %v239 = vsel %vm229, nan, %v238
    %241 = vrot.lane.b32.xlu0 %v239, 64
    %v242 = vpop.permute.xlu0 %241
    %vm244 = vcmask 523264
    %v245 = vsel %vm244, %v136, %v242
    %246 = vst [vmem:[#allocation2] sm:$0xff] %v245
    // Predicated region
    $region10: #{tpu_custom_call.1} parent=1 // pred_check
      _
    $region11: #{tpu_custom_call.1} parent=1 // pred_check_branch
      %248 = sbr.rel (0) target = $region13
    $region12: #{tpu_custom_call.1} parent=1 // pred_region
      %s250 = ssub.s32 128, 128
      %251 = vsyncadd [#allocation3], %s250
      %s253 = sshll.u32 [#allocation2], 4
      %s254 = int_to_ptr.vmem [resolvable:$true] %s253
      %256 = dma.vmem_to_hbm [thread:$0]  %s254, 128, %s2, [#allocation3]
    $region13: #{tpu_custom_call.1} parent=1 // pred_fallthru
      _
    // Predicated region
    $region14: #{tpu_custom_call.1} parent=1 // pred_check
      _
    $region15: #{tpu_custom_call.1} parent=1 // pred_check_branch
      %258 = sbr.rel (0) target = $region17
    $region16: #{tpu_custom_call.1} parent=1 // pred_region
      %259 = dma.done [#allocation3], 128
    $region17: #{tpu_custom_call.1} parent=1 // pred_fallthru
      _
    %260 = vsyncpa [#allocation3], 1

</llo_original>
